<compile_context>
chip_gen: v5e
topology: v5e:2x2
jax: 0.10.0
libtpu: 0.0.40
codegen_flags: <defaults>
</compile_context>

<pallas_src>
import functools
import math

import numpy as np
import jax
import jax.numpy as jnp
from jax import lax
from jax.experimental import pallas as pl
from jax.experimental.pallas import tpu as pltpu


# ---------------------------------------------------------------------------
# Phase 1: q/k/v projections (1x1 convs == per-pixel matmuls), once per tile.
# ---------------------------------------------------------------------------
def qkv_proj_kernel(x_ref, wq_ref, bq_ref, wk_ref, bk_ref, wv_ref, bv_ref,
                    q_ref, k_ref, v_ref):
    x = x_ref[0]                                                   # (TN, C) bf16
    q = jnp.dot(x, wq_ref[...], preferred_element_type=jnp.float32) + bq_ref[...]
    k = jnp.dot(x, wk_ref[...], preferred_element_type=jnp.float32) + bk_ref[...]
    v = jnp.dot(x, wv_ref[...], preferred_element_type=jnp.float32) + bv_ref[...]
    q_ref[0] = q.astype(q_ref.dtype)
    k_ref[0] = k.astype(k_ref.dtype)
    v_ref[0] = v.astype(v_ref.dtype)


# ---------------------------------------------------------------------------
# Phase 2: flash attention + gamma-residual epilogue.
# ---------------------------------------------------------------------------
def sa_flash_kernel(q_ref, k_ref, v_ref, x_ref, gamma_ref, o_ref,
                    m_scr, l_scr, acc_scr, *, n_valid, block_k):
    """One (batch, q-block, kv-block) grid step."""
    kj = pl.program_id(2)

    @pl.when(kj == 0)
    def _init():
        m_scr[...] = jnp.full_like(m_scr, -jnp.inf)
        l_scr[...] = jnp.zeros_like(l_scr)
        acc_scr[...] = jnp.zeros_like(acc_scr)

    q = q_ref[0]                                                   # (TQ, Cq) bf16
    k = k_ref[0]                                                   # (TK, Cq) bf16
    v = v_ref[0]                                                   # (TK, C)  bf16

    # logits[i, j] = q_i . k_j  (rhs-transposed contraction; no NxN transpose)
    s = lax.dot_general(q, k, (((1,), (1,)), ((), ())),
                        preferred_element_type=jnp.float32)        # (TQ, TK) f32

    if n_valid is not None:     # static: emitted only when N was padded
        col = kj * block_k + lax.broadcasted_iota(jnp.int32, s.shape, 1)
        s = jnp.where(col < n_valid, s, -1e30)

    # online softmax (f32)
    m_prev = m_scr[...]
    m_new = jnp.maximum(m_prev, jnp.max(s, axis=-1, keepdims=True))
    alpha = jnp.exp(m_prev - m_new)
    p = jnp.exp(s - m_new)                                         # (TQ, TK) f32
    l_scr[...] = alpha * l_scr[...] + jnp.sum(p, axis=-1, keepdims=True)
    acc_scr[...] = alpha * acc_scr[...] + jnp.dot(
        p.astype(v.dtype), v, preferred_element_type=jnp.float32)
    m_scr[...] = m_new

    @pl.when(kj == pl.num_programs(2) - 1)
    def _finalize():
        inv_l = pl.reciprocal(l_scr[...], approx=True)             # EUP, not VALU
        out = acc_scr[...] * inv_l                                 # (TQ, C) f32
        gamma = gamma_ref[0, 0]
        o_ref[0] = (gamma * out +
                    x_ref[0].astype(jnp.float32)).astype(o_ref.dtype)


def self_attention(x_nchw, wq, bq, wk, bk, wv, bv, gamma,
                   *, block_q=128, block_k=256):
    B, C, H, W = x_nchw.shape
    N = H * W
    Cq = wq.shape[0]

    # Spatial-major (B, N, C) in bf16.  The NCHW <-> BNC transposes are cheap
    # XLA work outside the kernels.
    x_sm = jnp.transpose(x_nchw.reshape(B, C, N), (0, 2, 1)).astype(jnp.bfloat16)

    # Pad N up to a common tile multiple; padded kv columns are masked inside
    # the flash kernel, padded q rows are dropped afterwards.
    tile = math.lcm(block_q, block_k)
    n_pad = ((N + tile - 1) // tile) * tile
    if n_pad != N:
        x_sm = jnp.pad(x_sm, ((0, 0), (0, n_pad - N), (0, 0)))

    # Pre-transposed bf16 weights, f32 biases (projections become plain
    # (T, C) @ (C, out) MXU matmuls).
    wq_t = jnp.transpose(wq).astype(jnp.bfloat16)                  # (C, Cq)
    wk_t = jnp.transpose(wk).astype(jnp.bfloat16)                  # (C, Cq)
    wv_t = jnp.transpose(wv).astype(jnp.bfloat16)                  # (C, C)
    bq_r = bq.reshape(1, Cq).astype(jnp.float32)
    bk_r = bk.reshape(1, Cq).astype(jnp.float32)
    bv_r = bv.reshape(1, C).astype(jnp.float32)
    gamma_r = gamma.reshape(1, 1).astype(jnp.float32)

    # ---- Phase 1: projections, once per (batch, spatial tile). ----
    tn = tile
    q_bnc, k_bnc, v_bnc = pl.pallas_call(
        qkv_proj_kernel,
        out_shape=(
            jax.ShapeDtypeStruct((B, n_pad, Cq), jnp.bfloat16),
            jax.ShapeDtypeStruct((B, n_pad, Cq), jnp.bfloat16),
            jax.ShapeDtypeStruct((B, n_pad, C), jnp.bfloat16),
        ),
        grid_spec=pltpu.PrefetchScalarGridSpec(
            num_scalar_prefetch=0,
            grid=(B, n_pad // tn),
            in_specs=[
                pl.BlockSpec((1, tn, C), lambda b, ni: (b, ni, 0)),
                pl.BlockSpec((C, Cq), lambda b, ni: (0, 0)),
                pl.BlockSpec((1, Cq), lambda b, ni: (0, 0)),
                pl.BlockSpec((C, Cq), lambda b, ni: (0, 0)),
                pl.BlockSpec((1, Cq), lambda b, ni: (0, 0)),
                pl.BlockSpec((C, C), lambda b, ni: (0, 0)),
                pl.BlockSpec((1, C), lambda b, ni: (0, 0)),
            ],
            out_specs=[
                pl.BlockSpec((1, tn, Cq), lambda b, ni: (b, ni, 0)),
                pl.BlockSpec((1, tn, Cq), lambda b, ni: (b, ni, 0)),
                pl.BlockSpec((1, tn, C), lambda b, ni: (b, ni, 0)),
            ],
        ),
        compiler_params=pltpu.CompilerParams(
            dimension_semantics=("parallel", "parallel")),
    )(x_sm, wq_t, bq_r, wk_t, bk_r, wv_t, bv_r)

    # ---- Phase 2: flash attention over precomputed bf16 q/k/v tiles. ----
    nq, nk = n_pad // block_q, n_pad // block_k
    kernel = functools.partial(
        sa_flash_kernel,
        n_valid=None if n_pad == N else N,
        block_k=block_k)

    out_sm = pl.pallas_call(
        kernel,
        out_shape=jax.ShapeDtypeStruct((B, n_pad, C), jnp.float32),
        grid_spec=pltpu.PrefetchScalarGridSpec(
            num_scalar_prefetch=0,
            grid=(B, nq, nk),
            in_specs=[
                pl.BlockSpec((1, block_q, Cq), lambda b, qi, kj: (b, qi, 0)),
                pl.BlockSpec((1, block_k, Cq), lambda b, qi, kj: (b, kj, 0)),
                pl.BlockSpec((1, block_k, C), lambda b, qi, kj: (b, kj, 0)),
                pl.BlockSpec((1, block_q, C), lambda b, qi, kj: (b, qi, 0)),
                pl.BlockSpec((1, 1), lambda b, qi, kj: (0, 0),
                             memory_space=pltpu.SMEM),
            ],
            out_specs=pl.BlockSpec((1, block_q, C),
                                   lambda b, qi, kj: (b, qi, 0)),
            scratch_shapes=[
                pltpu.VMEM((block_q, 1), jnp.float32),   # running row max
                pltpu.VMEM((block_q, 1), jnp.float32),   # running row denom
                pltpu.VMEM((block_q, C), jnp.float32),   # output accumulator
            ],
        ),
        compiler_params=pltpu.CompilerParams(
            dimension_semantics=("parallel", "parallel", "arbitrary")),
    )(q_bnc, k_bnc, v_bnc, x_sm, gamma_r)

    out_sm = out_sm[:, :N, :]
    return jnp.transpose(out_sm, (0, 2, 1)).reshape(B, C, H, W)


def reference(x_nchw, wq, bq, wk, bk, wv, bv, gamma):
    B, C, H, W = x_nchw.shape
    N = H * W
    x = x_nchw.reshape(B, C, N)
    q = jnp.einsum('qc,bcn->bqn', wq, x) + bq[None, :, None]      # (B, Cq, N)
    k = jnp.einsum('qc,bcn->bqn', wk, x) + bk[None, :, None]      # (B, Cq, N)
    v = jnp.einsum('vc,bcn->bvn', wv, x) + bv[None, :, None]      # (B, C,  N)
    logits = jnp.einsum('bci,bcj->bij', q, k)                     # (B, N, N)
    attn = jax.nn.softmax(logits, axis=-1)
    out = jnp.einsum('bcj,bij->bci', v, attn)                     # (B, C, N)
    out = gamma[0] * out + x
    return out.reshape(B, C, H, W)


def _run_case(key, B, C, H, W):
    Cq = C // 8
    kx, kwq, kbq, kwk, kbk, kwv, kbv = jax.random.split(key, 7)
    x = jax.random.normal(kx, (B, C, H, W), dtype=jnp.float32)
    wq = jax.random.normal(kwq, (Cq, C), dtype=jnp.float32) * 0.1
    bq = jax.random.normal(kbq, (Cq,), dtype=jnp.float32) * 0.1
    wk = jax.random.normal(kwk, (Cq, C), dtype=jnp.float32) * 0.1
    bk = jax.random.normal(kbk, (Cq,), dtype=jnp.float32) * 0.1
    wv = jax.random.normal(kwv, (C, C), dtype=jnp.float32) * 0.1
    bv = jax.random.normal(kbv, (C,), dtype=jnp.float32) * 0.1
    # PyTorch inits gamma to 0 (out == x); use a nonzero value so the
    # attention path is actually exercised.
    gamma = jnp.array([0.5], dtype=jnp.float32)

    out = jax.block_until_ready(
        self_attention(x, wq, bq, wk, bk, wv, bv, gamma))
    ref = reference(x, wq, bq, wk, bk, wv, bv, gamma)
    # bf16 x / bf16 MXU operands / approx reciprocal vs. f32 reference:
    # intentionally relaxed tolerance (design choice per review).
    np.testing.assert_allclose(np.asarray(out), np.asarray(ref),
                               rtol=2e-2, atol=3e-2)


if __name__ == "__main__":
    key = jax.random.PRNGKey(0)
    k1, k2 = jax.random.split(key)
    # Tile-divisible N: 16*16 = 256 with TQ=128, TK=256.
    _run_case(k1, B=2, C=64, H=16, W=16)
    # Non-divisible N: 12*12 = 144 -> padded to 256, exercises kv masking.
    _run_case(k2, B=2, C=64, H=12, W=12)
    print("KERNEL_OK")
</pallas_src>

<mosaic_0001>
module attributes {stable_mosaic.version = 11 : i64} {
  func.func @qkv_proj_kernel(%arg0: i32, %arg1: i32, %arg2: memref<1x256x64xbf16, #tpu.memory_space<vmem>>, %arg3: memref<64x8xbf16, #tpu.memory_space<vmem>>, %arg4: memref<1x8xf32, #tpu.memory_space<vmem>>, %arg5: memref<64x8xbf16, #tpu.memory_space<vmem>>, %arg6: memref<1x8xf32, #tpu.memory_space<vmem>>, %arg7: memref<64x64xbf16, #tpu.memory_space<vmem>>, %arg8: memref<1x64xf32, #tpu.memory_space<vmem>>, %arg9: memref<1x256x8xbf16, #tpu.memory_space<vmem>>, %arg10: memref<1x256x8xbf16, #tpu.memory_space<vmem>>, %arg11: memref<1x256x64xbf16, #tpu.memory_space<vmem>>) attributes {dimension_semantics = [#tpu.dimension_semantics<parallel>, #tpu.dimension_semantics<parallel>], iteration_bounds = array<i64: 2, 1>, scalar_prefetch = 0 : i64, scratch_operands = 0 : i64, tpu.core_type = #tpu.core_type<tc>, window_params = [{transform_indices = @transform_0, window_bounds = array<i64: 1, 256, 64>}, {pipeline_mode = #tpu.pipeline_mode<synchronous>, transform_indices = @transform_1, window_bounds = array<i64: 64, 8>}, {pipeline_mode = #tpu.pipeline_mode<synchronous>, transform_indices = @transform_2, window_bounds = array<i64: 1, 8>}, {pipeline_mode = #tpu.pipeline_mode<synchronous>, transform_indices = @transform_3, window_bounds = array<i64: 64, 8>}, {pipeline_mode = #tpu.pipeline_mode<synchronous>, transform_indices = @transform_4, window_bounds = array<i64: 1, 8>}, {pipeline_mode = #tpu.pipeline_mode<synchronous>, transform_indices = @transform_5, window_bounds = array<i64: 64, 64>}, {pipeline_mode = #tpu.pipeline_mode<synchronous>, transform_indices = @transform_6, window_bounds = array<i64: 1, 64>}, {transform_indices = @transform_7, window_bounds = array<i64: 1, 256, 8>}, {transform_indices = @transform_8, window_bounds = array<i64: 1, 256, 8>}, {transform_indices = @transform_9, window_bounds = array<i64: 1, 256, 64>}]} {
    %c0 = arith.constant 0 : index
    %c0_0 = arith.constant 0 : index
    %c0_1 = arith.constant 0 : index
    %0 = vector.load %arg2[%c0, %c0_0, %c0_1] : memref<1x256x64xbf16, #tpu.memory_space<vmem>>, vector<1x256x64xbf16>
    %1 = vector.shape_cast %0 : vector<1x256x64xbf16> to vector<256x64xbf16>
    %c0_2 = arith.constant 0 : index
    %c0_3 = arith.constant 0 : index
    %2 = vector.load %arg3[%c0_2, %c0_3] : memref<64x8xbf16, #tpu.memory_space<vmem>>, vector<64x8xbf16>
    %cst = arith.constant dense<0.000000e+00> : vector<256x8xf32>
    %3 = tpu.matmul %1, %2, %cst {dimension_numbers = #tpu.dot_dimension_numbers<[1], [0], [0], [1], [0, 0, 1, 1], [], []>} : vector<256x64xbf16>, vector<64x8xbf16>, vector<256x8xf32> -> vector<256x8xf32>
    %c0_4 = arith.constant 0 : index
    %c0_5 = arith.constant 0 : index
    %4 = vector.load %arg4[%c0_4, %c0_5] : memref<1x8xf32, #tpu.memory_space<vmem>>, vector<1x8xf32>
    %5 = vector.broadcast %4 : vector<1x8xf32> to vector<256x8xf32>
    %6 = arith.addf %3, %5 : vector<256x8xf32>
    %c0_6 = arith.constant 0 : index
    %c0_7 = arith.constant 0 : index
    %7 = vector.load %arg5[%c0_6, %c0_7] : memref<64x8xbf16, #tpu.memory_space<vmem>>, vector<64x8xbf16>
    %cst_8 = arith.constant dense<0.000000e+00> : vector<256x8xf32>
    %8 = tpu.matmul %1, %7, %cst_8 {dimension_numbers = #tpu.dot_dimension_numbers<[1], [0], [0], [1], [0, 0, 1, 1], [], []>} : vector<256x64xbf16>, vector<64x8xbf16>, vector<256x8xf32> -> vector<256x8xf32>
    %c0_9 = arith.constant 0 : index
    %c0_10 = arith.constant 0 : index
    %9 = vector.load %arg6[%c0_9, %c0_10] : memref<1x8xf32, #tpu.memory_space<vmem>>, vector<1x8xf32>
    %10 = vector.broadcast %9 : vector<1x8xf32> to vector<256x8xf32>
    %11 = arith.addf %8, %10 : vector<256x8xf32>
    %c0_11 = arith.constant 0 : index
    %c0_12 = arith.constant 0 : index
    %12 = vector.load %arg7[%c0_11, %c0_12] : memref<64x64xbf16, #tpu.memory_space<vmem>>, vector<64x64xbf16>
    %cst_13 = arith.constant dense<0.000000e+00> : vector<256x64xf32>
    %13 = tpu.matmul %1, %12, %cst_13 {dimension_numbers = #tpu.dot_dimension_numbers<[1], [0], [0], [1], [0, 0, 1, 1], [], []>} : vector<256x64xbf16>, vector<64x64xbf16>, vector<256x64xf32> -> vector<256x64xf32>
    %c0_14 = arith.constant 0 : index
    %c0_15 = arith.constant 0 : index
    %14 = vector.load %arg8[%c0_14, %c0_15] : memref<1x64xf32, #tpu.memory_space<vmem>>, vector<1x64xf32>
    %15 = vector.broadcast %14 : vector<1x64xf32> to vector<256x64xf32>
    %16 = arith.addf %13, %15 : vector<256x64xf32>
    %17 = arith.truncf %6 : vector<256x8xf32> to vector<256x8xbf16>
    %c0_16 = arith.constant 0 : index
    %c0_17 = arith.constant 0 : index
    %c0_18 = arith.constant 0 : index
    %18 = vector.load %arg9[%c0_16, %c0_17, %c0_18] : memref<1x256x8xbf16, #tpu.memory_space<vmem>>, vector<1x256x8xbf16>
    %19 = vector.shape_cast %18 : vector<1x256x8xbf16> to vector<256x8xbf16>
    %20 = vector.shape_cast %17 : vector<256x8xbf16> to vector<1x256x8xbf16>
    tpu.vector_store %arg9[%c0_16, %c0_17, %c0_18], %20 {strides = array<i32>} : memref<1x256x8xbf16, #tpu.memory_space<vmem>>, vector<1x256x8xbf16>,
    %21 = arith.truncf %11 : vector<256x8xf32> to vector<256x8xbf16>
    %c0_19 = arith.constant 0 : index
    %c0_20 = arith.constant 0 : index
    %c0_21 = arith.constant 0 : index
    %22 = vector.load %arg10[%c0_19, %c0_20, %c0_21] : memref<1x256x8xbf16, #tpu.memory_space<vmem>>, vector<1x256x8xbf16>
    %23 = vector.shape_cast %22 : vector<1x256x8xbf16> to vector<256x8xbf16>
    %24 = vector.shape_cast %21 : vector<256x8xbf16> to vector<1x256x8xbf16>
    tpu.vector_store %arg10[%c0_19, %c0_20, %c0_21], %24 {strides = array<i32>} : memref<1x256x8xbf16, #tpu.memory_space<vmem>>, vector<1x256x8xbf16>,
    %25 = arith.truncf %16 : vector<256x64xf32> to vector<256x64xbf16>
    %c0_22 = arith.constant 0 : index
    %c0_23 = arith.constant 0 : index
    %c0_24 = arith.constant 0 : index
    %26 = vector.load %arg11[%c0_22, %c0_23, %c0_24] : memref<1x256x64xbf16, #tpu.memory_space<vmem>>, vector<1x256x64xbf16>
    %27 = vector.shape_cast %26 : vector<1x256x64xbf16> to vector<256x64xbf16>
    %28 = vector.shape_cast %25 : vector<256x64xbf16> to vector<1x256x64xbf16>
    tpu.vector_store %arg11[%c0_22, %c0_23, %c0_24], %28 {strides = array<i32>} : memref<1x256x64xbf16, #tpu.memory_space<vmem>>, vector<1x256x64xbf16>,
    return
  }
  func.func @transform_0(%arg0: i32, %arg1: i32) -> (i32, i32, i32) {
    %c0_i32 = arith.constant 0 : i32
    %c0_i32_0 = arith.constant 0 : i32
    return %arg0, %arg1, %c0_i32 : i32, i32, i32
  }
  func.func @transform_1(%arg0: i32, %arg1: i32) -> (i32, i32) {
    %c0_i32 = arith.constant 0 : i32
    %c0_i32_0 = arith.constant 0 : i32
    %c0_i32_1 = arith.constant 0 : i32
    return %c0_i32, %c0_i32_0 : i32, i32
  }
  func.func @transform_2(%arg0: i32, %arg1: i32) -> (i32, i32) {
    %c0_i32 = arith.constant 0 : i32
    %c0_i32_0 = arith.constant 0 : i32
    %c0_i32_1 = arith.constant 0 : i32
    return %c0_i32, %c0_i32_0 : i32, i32
  }
  func.func @transform_3(%arg0: i32, %arg1: i32) -> (i32, i32) {
    %c0_i32 = arith.constant 0 : i32
    %c0_i32_0 = arith.constant 0 : i32
    %c0_i32_1 = arith.constant 0 : i32
    return %c0_i32, %c0_i32_0 : i32, i32
  }
  func.func @transform_4(%arg0: i32, %arg1: i32) -> (i32, i32) {
    %c0_i32 = arith.constant 0 : i32
    %c0_i32_0 = arith.constant 0 : i32
    %c0_i32_1 = arith.constant 0 : i32
    return %c0_i32, %c0_i32_0 : i32, i32
  }
  func.func @transform_5(%arg0: i32, %arg1: i32) -> (i32, i32) {
    %c0_i32 = arith.constant 0 : i32
    %c0_i32_0 = arith.constant 0 : i32
    %c0_i32_1 = arith.constant 0 : i32
    return %c0_i32, %c0_i32_0 : i32, i32
  }
  func.func @transform_6(%arg0: i32, %arg1: i32) -> (i32, i32) {
    %c0_i32 = arith.constant 0 : i32
    %c0_i32_0 = arith.constant 0 : i32
    %c0_i32_1 = arith.constant 0 : i32
    return %c0_i32, %c0_i32_0 : i32, i32
  }
  func.func @transform_7(%arg0: i32, %arg1: i32) -> (i32, i32, i32) {
    %c0_i32 = arith.constant 0 : i32
    %c0_i32_0 = arith.constant 0 : i32
    return %arg0, %arg1, %c0_i32 : i32, i32, i32
  }
  func.func @transform_8(%arg0: i32, %arg1: i32) -> (i32, i32, i32) {
    %c0_i32 = arith.constant 0 : i32
    %c0_i32_0 = arith.constant 0 : i32
    return %arg0, %arg1, %c0_i32 : i32, i32, i32
  }
  func.func @transform_9(%arg0: i32, %arg1: i32) -> (i32, i32, i32) {
    %c0_i32 = arith.constant 0 : i32
    %c0_i32_0 = arith.constant 0 : i32
    return %arg0, %arg1, %c0_i32 : i32, i32, i32
  }
}

</mosaic_0001>

<llo_original>
// kernel: tpu_custom_call.1
$region0: #{tpu_custom_call.1}
  #allocation0 [shape = 'u32[]', space=smem, size = 0x4, offset = 0x4, fixed_abs, tag = 'smem constant byte address 0x4 - core index']
  #allocation1 [shape = 'u32[72,128]{1,0:T(1,128)}', space=vmem, size = 0x9000, scoped, tag = 'internal scratch']
  %s0 = inlined_call_operand.vmem [shape: bf16[2,256,64], index: 0, kind: input, shape index: {}]
  %s1 = inlined_call_operand.vmem [shape: bf16[64,8], index: 1, kind: input, shape index: {}]
  %s2 = inlined_call_operand.vmem [shape: f32[1,8], index: 2, kind: input, shape index: {}]
  %s3 = inlined_call_operand.vmem [shape: bf16[64,8], index: 3, kind: input, shape index: {}]
  %s4 = inlined_call_operand.vmem [shape: f32[1,8], index: 4, kind: input, shape index: {}]
  %s5 = inlined_call_operand.vmem [shape: bf16[64,64], index: 5, kind: input, shape index: {}]
  %s6 = inlined_call_operand.vmem [shape: f32[1,64], index: 6, kind: input, shape index: {}]
  %s7 = inlined_call_operand.vmem [shape: bf16[2,256,8], index: 7, kind: output, shape index: {0}]
  %s8 = inlined_call_operand.vmem [shape: bf16[2,256,8], index: 8, kind: output, shape index: {1}]
  %s9 = inlined_call_operand.vmem [shape: bf16[2,256,64], index: 9, kind: output, shape index: {2}]
  %10 = xla_tuple %s7, %s8, %s9
  %s11 = sld [smem:[#allocation0]]
  $region77: #{tpu_custom_call.1} parent=0
    _
  %s13 = ssub.s32 1, %s11
  %s14 = scalar_select 0, %s13, %s11
  loop: start=0, step=1, limit=4
  $region2: #{tpu_custom_call.1} parent=0 // loop_pre_header
    _
  $region3: #{tpu_custom_call.1} parent=0 // loop_header
    %s16 = sphi 0, %s20
    %p17 = scmp.ge.s32.totalorder %s16, 4
    %s23 = sphi 0, %s35
    %s24 = sphi 0, %s31
    %s25 = sphi 0, %s23
    %s26 = sphi 0, %s24
    %s27 = sphi 0, %s25
    %s28 = sphi 0, %s26
    %s40 = sphi 0, %s42
    %s43 = sphi 0, %s40
    %s44 = sphi 0, %s43
    %s60 = sphi 0, %s44
    %s64 = sphi 0, %s64
    %s66 = sphi 0, %s64
    %s67 = sphi 0, %s66
    %s81 = sphi 0, %s67
    %s85 = sphi 0, %s85
    %s87 = sphi 0, %s85
    %s88 = sphi 0, %s87
    %s102 = sphi 0, %s88
    %s106 = sphi 0, %s106
    %s108 = sphi 0, %s106
    %s109 = sphi 0, %s108
    %s123 = sphi 0, %s109
    %s127 = sphi 0, %s127
    %s129 = sphi 0, %s127
    %s130 = sphi 0, %s129
    %s144 = sphi 0, %s130
    %s148 = sphi 0, %s148
    %s150 = sphi 0, %s148
    %s151 = sphi 0, %s150
    %s165 = sphi 0, %s151
    %s169 = sphi 0, %s169
    %s171 = sphi 0, %s169
    %s172 = sphi 0, %s171
    %s186 = sphi 0, %s172
    %s194 = sphi 0, %s196
    %s197 = sphi 0, %s194
    %s198 = sphi 0, %s197
    %s214 = sphi 0, %s198
    %s222 = sphi 0, %s224
    %s225 = sphi 0, %s222
    %s226 = sphi 0, %s225
    %s242 = sphi 0, %s226
    %s250 = sphi 0, %s252
    %s253 = sphi 0, %s250
    %s254 = sphi 0, %s253
    %s270 = sphi 0, %s254
  $region4: #{tpu_custom_call.1} parent=0 // loop_header_branch
    %19 = sbr.rel (%p17) target = $region8
  $region5: #{tpu_custom_call.1} parent=0 // loop_body
    %s21 = ssub.s32 %s16, 1
    %s22 = ssub.s32 %s16, 2
    %s29 = sadd.s32 1, %s24
    %p30 = scmp.ge.s32.totalorder %s29, 1
    %s31 = scalar_select %p30, 0, %s29
    %s32 = sadd.s32 1, %s23
    %s33 = scalar_select %p30, %s32, %s23
    %p34 = scmp.ge.s32.totalorder %s33, 2
    %s35 = scalar_select %p34, 0, %s33
    %s36 = ssub.s32 %s23, %s35
    %s37 = ssub.s32 %s24, %s31
    %s38 = sor.u32 %s36, %s37
    %p39 = scmp.eq.s32.totalorder %s38, 0
    %s41 = sadd.s32 %s40, 1
    %s42 = scalar_select %p39, %s40, %s41
    %p45 = pneg %p39
    %p46 = scmp.eq.s32.totalorder %s16, 1
    %p47 = por %p45, %p46
    %p48 = scmp.ne.s32.totalorder %s40, %s43
    %p49 = scmp.eq.s32.totalorder %s16, 0
    %p50 = por %p48, %p49
    %p51 = scmp.ne.s32.totalorder %s40, %s43
    %p52 = scmp.eq.s32.totalorder %s21, 1
    %p53 = por %p51, %p52
    %p54 = scmp.ne.s32.totalorder %s43, %s44
    %p55 = scmp.eq.s32.totalorder %s21, 0
    %p56 = por %p54, %p55
    %p57 = scmp.ne.s32.totalorder %s43, %s44
    %p58 = scmp.eq.s32.totalorder %s22, 1
    %p59 = por %p57, %p58
    %p61 = scmp.ne.s32.totalorder %s44, %s60
    %p62 = scmp.eq.s32.totalorder %s22, 0
    %p63 = por %p61, %p62
    %s65 = sadd.s32 %s64, 1
    %p68 = scmp.eq.s32.totalorder %s16, 1
    %p69 = scmp.ne.s32.totalorder %s64, %s66
    %p70 = scmp.eq.s32.totalorder %s16, 0
    %p71 = por %p69, %p70
    %p72 = scmp.ne.s32.totalorder %s64, %s66
    %p73 = scmp.eq.s32.totalorder %s21, 1
    %p74 = por %p72, %p73
    %p75 = scmp.ne.s32.totalorder %s66, %s67
    %p76 = scmp.eq.s32.totalorder %s21, 0
    %p77 = por %p75, %p76
    %p78 = scmp.ne.s32.totalorder %s66, %s67
    %p79 = scmp.eq.s32.totalorder %s22, 1
    %p80 = por %p78, %p79
    %p82 = scmp.ne.s32.totalorder %s67, %s81
    %p83 = scmp.eq.s32.totalorder %s22, 0
    %p84 = por %p82, %p83
    %s86 = sadd.s32 %s85, 1
    %p89 = scmp.eq.s32.totalorder %s16, 1
    %p90 = scmp.ne.s32.totalorder %s85, %s87
    %p91 = scmp.eq.s32.totalorder %s16, 0
    %p92 = por %p90, %p91
    %p93 = scmp.ne.s32.totalorder %s85, %s87
    %p94 = scmp.eq.s32.totalorder %s21, 1
    %p95 = por %p93, %p94
    %p96 = scmp.ne.s32.totalorder %s87, %s88
    %p97 = scmp.eq.s32.totalorder %s21, 0
    %p98 = por %p96, %p97
    %p99 = scmp.ne.s32.totalorder %s87, %s88
    %p100 = scmp.eq.s32.totalorder %s22, 1
    %p101 = por %p99, %p100
    %p103 = scmp.ne.s32.totalorder %s88, %s102
    %p104 = scmp.eq.s32.totalorder %s22, 0
    %p105 = por %p103, %p104
    %s107 = sadd.s32 %s106, 1
    %p110 = scmp.eq.s32.totalorder %s16, 1
    %p111 = scmp.ne.s32.totalorder %s106, %s108
    %p112 = scmp.eq.s32.totalorder %s16, 0
    %p113 = por %p111, %p112
    %p114 = scmp.ne.s32.totalorder %s106, %s108
    %p115 = scmp.eq.s32.totalorder %s21, 1
    %p116 = por %p114, %p115
    %p117 = scmp.ne.s32.totalorder %s108, %s109
    %p118 = scmp.eq.s32.totalorder %s21, 0
    %p119 = por %p117, %p118
    %p120 = scmp.ne.s32.totalorder %s108, %s109
    %p121 = scmp.eq.s32.totalorder %s22, 1
    %p122 = por %p120, %p121
    %p124 = scmp.ne.s32.totalorder %s109, %s123
    %p125 = scmp.eq.s32.totalorder %s22, 0
    %p126 = por %p124, %p125
    %s128 = sadd.s32 %s127, 1
    %p131 = scmp.eq.s32.totalorder %s16, 1
    %p132 = scmp.ne.s32.totalorder %s127, %s129
    %p133 = scmp.eq.s32.totalorder %s16, 0
    %p134 = por %p132, %p133
    %p135 = scmp.ne.s32.totalorder %s127, %s129
    %p136 = scmp.eq.s32.totalorder %s21, 1
    %p137 = por %p135, %p136
    %p138 = scmp.ne.s32.totalorder %s129, %s130
    %p139 = scmp.eq.s32.totalorder %s21, 0
    %p140 = por %p138, %p139
    %p141 = scmp.ne.s32.totalorder %s129, %s130
    %p142 = scmp.eq.s32.totalorder %s22, 1
    %p143 = por %p141, %p142
    %p145 = scmp.ne.s32.totalorder %s130, %s144
    %p146 = scmp.eq.s32.totalorder %s22, 0
    %p147 = por %p145, %p146
    %s149 = sadd.s32 %s148, 1
    %p152 = scmp.eq.s32.totalorder %s16, 1
    %p153 = scmp.ne.s32.totalorder %s148, %s150
    %p154 = scmp.eq.s32.totalorder %s16, 0
    %p155 = por %p153, %p154
    %p156 = scmp.ne.s32.totalorder %s148, %s150
    %p157 = scmp.eq.s32.totalorder %s21, 1
    %p158 = por %p156, %p157
    %p159 = scmp.ne.s32.totalorder %s150, %s151
    %p160 = scmp.eq.s32.totalorder %s21, 0
    %p161 = por %p159, %p160
    %p162 = scmp.ne.s32.totalorder %s150, %s151
    %p163 = scmp.eq.s32.totalorder %s22, 1
    %p164 = por %p162, %p163
    %p166 = scmp.ne.s32.totalorder %s151, %s165
    %p167 = scmp.eq.s32.totalorder %s22, 0
    %p168 = por %p166, %p167
    %s170 = sadd.s32 %s169, 1
    %p173 = scmp.eq.s32.totalorder %s16, 1
    %p174 = scmp.ne.s32.totalorder %s169, %s171
    %p175 = scmp.eq.s32.totalorder %s16, 0
    %p176 = por %p174, %p175
    %p177 = scmp.ne.s32.totalorder %s169, %s171
    %p178 = scmp.eq.s32.totalorder %s21, 1
    %p179 = por %p177, %p178
    %p180 = scmp.ne.s32.totalorder %s171, %s172
    %p181 = scmp.eq.s32.totalorder %s21, 0
    %p182 = por %p180, %p181
    %p183 = scmp.ne.s32.totalorder %s171, %s172
    %p184 = scmp.eq.s32.totalorder %s22, 1
    %p185 = por %p183, %p184
    %p187 = scmp.ne.s32.totalorder %s172, %s186
    %p188 = scmp.eq.s32.totalorder %s22, 0
    %p189 = por %p187, %p188
    %s190 = ssub.s32 %s23, %s35
    %s191 = ssub.s32 %s24, %s31
    %s192 = sor.u32 %s190, %s191
    %p193 = scmp.eq.s32.totalorder %s192, 0
    %s195 = sadd.s32 %s194, 1
    %s196 = scalar_select %p193, %s194, %s195
    %p199 = pneg %p193
    %p200 = scmp.eq.s32.totalorder %s16, 1
    %p201 = por %p199, %p200
    %p202 = scmp.ne.s32.totalorder %s194, %s197
    %p203 = scmp.eq.s32.totalorder %s16, 0
    %p204 = por %p202, %p203
    %p205 = scmp.ne.s32.totalorder %s194, %s197
    %p206 = scmp.eq.s32.totalorder %s21, 1
    %p207 = por %p205, %p206
    %p208 = scmp.ne.s32.totalorder %s197, %s198
    %p209 = scmp.eq.s32.totalorder %s21, 0
    %p210 = por %p208, %p209
    %p211 = scmp.ne.s32.totalorder %s197, %s198
    %p212 = scmp.eq.s32.totalorder %s22, 1
    %p213 = por %p211, %p212
    %p215 = scmp.ne.s32.totalorder %s198, %s214
    %p216 = scmp.eq.s32.totalorder %s22, 0
    %p217 = por %p215, %p216
    %s218 = ssub.s32 %s23, %s35
    %s219 = ssub.s32 %s24, %s31
    %s220 = sor.u32 %s218, %s219
    %p221 = scmp.eq.s32.totalorder %s220, 0
    %s223 = sadd.s32 %s222, 1
    %s224 = scalar_select %p221, %s222, %s223
    %p227 = pneg %p221
    %p228 = scmp.eq.s32.totalorder %s16, 1
    %p229 = por %p227, %p228
    %p230 = scmp.ne.s32.totalorder %s222, %s225
    %p231 = scmp.eq.s32.totalorder %s16, 0
    %p232 = por %p230, %p231
    %p233 = scmp.ne.s32.totalorder %s222, %s225
    %p234 = scmp.eq.s32.totalorder %s21, 1
    %p235 = por %p233, %p234
    %p236 = scmp.ne.s32.totalorder %s225, %s226
    %p237 = scmp.eq.s32.totalorder %s21, 0
    %p238 = por %p236, %p237
    %p239 = scmp.ne.s32.totalorder %s225, %s226
    %p240 = scmp.eq.s32.totalorder %s22, 1
    %p241 = por %p239, %p240
    %p243 = scmp.ne.s32.totalorder %s226, %s242
    %p244 = scmp.eq.s32.totalorder %s22, 0
    %p245 = por %p243, %p244
    %s246 = ssub.s32 %s23, %s35
    %s247 = ssub.s32 %s24, %s31
    %s248 = sor.u32 %s246, %s247
    %p249 = scmp.eq.s32.totalorder %s248, 0
    %s251 = sadd.s32 %s250, 1
    %s252 = scalar_select %p249, %s250, %s251
    %p255 = pneg %p249
    %p256 = scmp.eq.s32.totalorder %s16, 1
    %p257 = por %p255, %p256
    %p258 = scmp.ne.s32.totalorder %s250, %s253
    %p259 = scmp.eq.s32.totalorder %s16, 0
    %p260 = por %p258, %p259
    %p261 = scmp.ne.s32.totalorder %s250, %s253
    %p262 = scmp.eq.s32.totalorder %s21, 1
    %p263 = por %p261, %p262
    %p264 = scmp.ne.s32.totalorder %s253, %s254
    %p265 = scmp.eq.s32.totalorder %s21, 0
    %p266 = por %p264, %p265
    %p267 = scmp.ne.s32.totalorder %s253, %s254
    %p268 = scmp.eq.s32.totalorder %s22, 1
    %p269 = por %p267, %p268
    %p271 = scmp.ne.s32.totalorder %s254, %s270
    %p272 = scmp.eq.s32.totalorder %s22, 0
    %p273 = por %p271, %p272
    %p274 = scmp.le.s32.totalorder 1, %s16
    %p275 = scmp.lt.s32.totalorder %s16, 3
    %p276 = pnand %p274, %p275
    %p277 = pneg %p276
    // Predicated region
    $region9: #{tpu_custom_call.1} parent=5 // pred_check
      _
    $region10: #{tpu_custom_call.1} parent=5 // pred_check_branch
      %279 = sbr.rel (%p276) target = $region12
    $region11: #{tpu_custom_call.1} parent=5 // pred_region
      %s280 = ssub.s32 %s16, 1
      // Predicated region
      $region13: #{tpu_custom_call.1} parent=11 // pred_check
        %p281 = pneg %p77
      $region14: #{tpu_custom_call.1} parent=11 // pred_check_branch
        %283 = sbr.rel (%p281) target = $region16
      $region15: #{tpu_custom_call.1} parent=11 // pred_region
        _
      $region16: #{tpu_custom_call.1} parent=11 // pred_fallthru
        _
      // Predicated region
      $region17: #{tpu_custom_call.1} parent=11 // pred_check
        %p284 = pneg %p98
      $region18: #{tpu_custom_call.1} parent=11 // pred_check_branch
        %286 = sbr.rel (%p284) target = $region20
      $region19: #{tpu_custom_call.1} parent=11 // pred_region
        _
      $region20: #{tpu_custom_call.1} parent=11 // pred_fallthru
        _
      // Predicated region
      $region21: #{tpu_custom_call.1} parent=11 // pred_check
        %p287 = pneg %p119
      $region22: #{tpu_custom_call.1} parent=11 // pred_check_branch
        %289 = sbr.rel (%p287) target = $region24
      $region23: #{tpu_custom_call.1} parent=11 // pred_region
        _
      $region24: #{tpu_custom_call.1} parent=11 // pred_fallthru
        _
      // Predicated region
      $region25: #{tpu_custom_call.1} parent=11 // pred_check
        %p290 = pneg %p140
      $region26: #{tpu_custom_call.1} parent=11 // pred_check_branch
        %292 = sbr.rel (%p290) target = $region28
      $region27: #{tpu_custom_call.1} parent=11 // pred_region
        _
      $region28: #{tpu_custom_call.1} parent=11 // pred_fallthru
        _
      // Predicated region
      $region29: #{tpu_custom_call.1} parent=11 // pred_check
        %p293 = pneg %p161
      $region30: #{tpu_custom_call.1} parent=11 // pred_check_branch
        %295 = sbr.rel (%p293) target = $region32
      $region31: #{tpu_custom_call.1} parent=11 // pred_region
        _
      $region32: #{tpu_custom_call.1} parent=11 // pred_fallthru
        _
      // Predicated region
      $region33: #{tpu_custom_call.1} parent=11 // pred_check
        %p296 = pneg %p182
      $region34: #{tpu_custom_call.1} parent=11 // pred_check_branch
        %298 = sbr.rel (%p296) target = $region36
      $region35: #{tpu_custom_call.1} parent=11 // pred_region
        _
      $region36: #{tpu_custom_call.1} parent=11 // pred_fallthru
        _
    $region12: #{tpu_custom_call.1} parent=5 // pred_fallthru
      _
    %p299 = scmp.lt.s32.totalorder %s16, 2
    // Predicated region
    $region37: #{tpu_custom_call.1} parent=5 // pred_check
      %p300 = pneg %p299
    $region38: #{tpu_custom_call.1} parent=5 // pred_check_branch
      %302 = sbr.rel (%p300) target = $region40
    $region39: #{tpu_custom_call.1} parent=5 // pred_region
      // Predicated region
      $region41: #{tpu_custom_call.1} parent=39 // pred_check
        %p303 = pneg %p50
      $region42: #{tpu_custom_call.1} parent=39 // pred_check_branch
        %305 = sbr.rel (%p303) target = $region44
      $region43: #{tpu_custom_call.1} parent=39 // pred_region
        %s306 = smul.u32 32, %s24
        %p307 = scmp.lt.s32.totalorder %s23, 1
        %s308 = scalar_select %p307, %s23, 1
        %p309 = scmp.lt.s32.totalorder %s306, 31
        %s310 = scalar_select %p309, %s306, 31
        %s311 = smul.addr %s308, 32
        %s312 = sadd.s32 %s310, %s311
        %s313 = smul.addr %s312, 4
        %s314 = scalar_lea.vmem %s0, %s313
        %s315 = smul.u32 32, %s24
      $region44: #{tpu_custom_call.1} parent=39 // pred_fallthru
        _
    $region40: #{tpu_custom_call.1} parent=5 // pred_fallthru
      _
    %p316 = scmp.le.s32.totalorder 1, %s16
    %p317 = scmp.lt.s32.totalorder %s16, 3
    %p318 = pnand %p316, %p317
    %p319 = pneg %p318
    // Predicated region
    $region45: #{tpu_custom_call.1} parent=5 // pred_check
      _
    $region46: #{tpu_custom_call.1} parent=5 // pred_check_branch
      %321 = sbr.rel (%p318) target = $region48
    $region47: #{tpu_custom_call.1} parent=5 // pred_region
      %s322 = ssub.s32 %s16, 1
      %s323 = smul.u32 32, %s26
      %p324 = scmp.lt.s32.totalorder %s25, 1
      %s325 = scalar_select %p324, %s25, 1
      %p326 = scmp.lt.s32.totalorder %s323, 31
      %s327 = scalar_select %p326, %s323, 31
      %s328 = smul.addr %s325, 32
      %s329 = sadd.s32 %s327, %s328
      %s330 = smul.addr %s329, 4
      %s331 = scalar_lea.vmem %s0, %s330
      %p332 = pneg %p56
      %p333 = pneg %p53
      %p334 = pneg %p77
      %p335 = pneg %p74
      %p336 = pneg %p98
      %p337 = pneg %p95
      %p338 = pneg %p119
      %p339 = pneg %p116
      %p340 = pneg %p140
      %p341 = pneg %p137
      %p342 = pneg %p161
      %p343 = pneg %p158
      %p344 = pneg %p182
      %p345 = pneg %p179
      %p346 = pneg %p210
      %p347 = pneg %p207
      %s348 = smul.u32 32, %s26
      %p349 = scmp.lt.s32.totalorder %s25, 1
      %s350 = scalar_select %p349, %s25, 1
      %p351 = scmp.lt.s32.totalorder %s348, 31
      %s352 = scalar_select %p351, %s348, 31
      %s353 = smul.addr %s350, 32
      %s354 = sadd.s32 %s352, %s353
      %s355 = smul.addr %s354, 4
      %s356 = scalar_lea.vmem %s7, %s355
      %p357 = pneg %p238
      %p358 = pneg %p235
      %s359 = smul.u32 32, %s26
      %p360 = scmp.lt.s32.totalorder %s25, 1
      %s361 = scalar_select %p360, %s25, 1
      %p362 = scmp.lt.s32.totalorder %s359, 31
      %s363 = scalar_select %p362, %s359, 31
      %s364 = smul.addr %s361, 32
      %s365 = sadd.s32 %s363, %s364
      %s366 = smul.addr %s365, 4
      %s367 = scalar_lea.vmem %s8, %s366
      %p368 = pneg %p266
      %p369 = pneg %p263
      %s370 = smul.u32 32, %s26
      %p371 = scmp.lt.s32.totalorder %s25, 1
      %s372 = scalar_select %p371, %s25, 1
      %p373 = scmp.lt.s32.totalorder %s370, 31
      %s374 = scalar_select %p373, %s370, 31
      %s375 = smul.addr %s372, 32
      %s376 = sadd.s32 %s374, %s375
      %s377 = smul.addr %s376, 4
      %s378 = scalar_lea.vmem %s9, %s377
      %s379 = smul.u32 32, %s26
      %p380 = scmp.lt.s32.totalorder %s25, 1
      %s381 = scalar_select %p380, %s25, 1
      %p382 = scmp.lt.s32.totalorder %s379, 31
      %s383 = scalar_select %p382, %s379, 31
      %s384 = smul.addr %s381, 32
      %s385 = sadd.s32 %s383, %s384
      %s386 = smul.addr %s385, 4
      %s387 = scalar_lea.vmem %s0, %s386
      %s388 = smul.u32 32, %s26
      %s389 = smul.u32 32, %s26
      %p390 = scmp.lt.s32.totalorder %s25, 1
      %s391 = scalar_select %p390, %s25, 1
      %p392 = scmp.lt.s32.totalorder %s389, 31
      %s393 = scalar_select %p392, %s389, 31
      %s394 = smul.addr %s391, 32
      %s395 = sadd.s32 %s393, %s394
      %s396 = smul.addr %s395, 4
      %s397 = scalar_lea.vmem %s7, %s396
      %s398 = smul.u32 32, %s26
      %s399 = smul.u32 32, %s26
      %p400 = scmp.lt.s32.totalorder %s25, 1
      %s401 = scalar_select %p400, %s25, 1
      %p402 = scmp.lt.s32.totalorder %s399, 31
      %s403 = scalar_select %p402, %s399, 31
      %s404 = smul.addr %s401, 32
      %s405 = sadd.s32 %s403, %s404
      %s406 = smul.addr %s405, 4
      %s407 = scalar_lea.vmem %s8, %s406
      %s408 = smul.u32 32, %s26
      %s409 = smul.u32 32, %s26
      %p410 = scmp.lt.s32.totalorder %s25, 1
      %s411 = scalar_select %p410, %s25, 1
      %p412 = scmp.lt.s32.totalorder %s409, 31
      %s413 = scalar_select %p412, %s409, 31
      %s414 = smul.addr %s411, 32
      %s415 = sadd.s32 %s413, %s414
      %s416 = smul.addr %s415, 4
      %s417 = scalar_lea.vmem %s9, %s416
      %s418 = smul.u32 32, %s26
      %v420 = vld [vmem:[%s387] sm:$0xf]
      %v421 = vld [vmem:[%s387 + $0x4] sm:$0xf]
      %v422 = vld [vmem:[%s387 + $0x8] sm:$0xf]
      %v423 = vld [vmem:[%s387 + $0xc] sm:$0xf]
      %v424 = vld [vmem:[%s387 + $0x10] sm:$0xf]
      %v425 = vld [vmem:[%s387 + $0x14] sm:$0xf]
      %v426 = vld [vmem:[%s387 + $0x18] sm:$0xf]
      %v427 = vld [vmem:[%s387 + $0x1c] sm:$0xf]
      %v428 = vld [vmem:[%s387 + $0x20] sm:$0xf]
      %v429 = vld [vmem:[%s387 + $0x24] sm:$0xf]
      %v430 = vld [vmem:[%s387 + $0x28] sm:$0xf]
      %v431 = vld [vmem:[%s387 + $0x2c] sm:$0xf]
      %v432 = vld [vmem:[%s387 + $0x30] sm:$0xf]
      %v433 = vld [vmem:[%s387 + $0x34] sm:$0xf]
      %v434 = vld [vmem:[%s387 + $0x38] sm:$0xf]
      %v435 = vld [vmem:[%s387 + $0x3c] sm:$0xf]
      %v436 = vld [vmem:[%s387 + $0x40] sm:$0xf]
      %v437 = vld [vmem:[%s387 + $0x44] sm:$0xf]
      %v438 = vld [vmem:[%s387 + $0x48] sm:$0xf]
      %v439 = vld [vmem:[%s387 + $0x4c] sm:$0xf]
      %v440 = vld [vmem:[%s387 + $0x50] sm:$0xf]
      %v441 = vld [vmem:[%s387 + $0x54] sm:$0xf]
      %v442 = vld [vmem:[%s387 + $0x58] sm:$0xf]
      %v443 = vld [vmem:[%s387 + $0x5c] sm:$0xf]
      %v444 = vld [vmem:[%s387 + $0x60] sm:$0xf]
      %v445 = vld [vmem:[%s387 + $0x64] sm:$0xf]
      %v446 = vld [vmem:[%s387 + $0x68] sm:$0xf]
      %v447 = vld [vmem:[%s387 + $0x6c] sm:$0xf]
      %v448 = vld [vmem:[%s387 + $0x70] sm:$0xf]
      %v449 = vld [vmem:[%s387 + $0x74] sm:$0xf]
      %v450 = vld [vmem:[%s387 + $0x78] sm:$0xf]
      %v451 = vld [vmem:[%s387 + $0x7c] sm:$0xf]
      %v452 = vld [vmem:[%s1] sm:$0xf]
      %v453 = vld [vmem:[%s1 + $0x4] sm:$0xf]
      %v454 = vld [vmem:[%s1 + $0x8] sm:$0xf]
      %v455 = vld [vmem:[%s1 + $0xc] sm:$0xf]
      %v456 = vld [vmem:[%s1 + $0x10] sm:$0xf]
      %v457 = vld [vmem:[%s1 + $0x14] sm:$0xf]
      %v458 = vld [vmem:[%s1 + $0x18] sm:$0xf]
      %v459 = vld [vmem:[%s1 + $0x1c] sm:$0xf]
      %v460 = vld [vmem:[%s2] sm:$0x1]
      %v462 = vperm.slane %v460, 0
      %v496 = vunpack.c.l.b16 %v420
      %v497 = vunpack.c.l.b16 %v421
      %v498 = vunpack.c.l.b16 %v422
      %v499 = vunpack.c.l.b16 %v423
      %v500 = vunpack.c.l.b16 %v424
      %v501 = vunpack.c.l.b16 %v425
      %v502 = vunpack.c.l.b16 %v426
      %v503 = vunpack.c.l.b16 %v427
      %v504 = vunpack.c.l.b16 %v428
      %v505 = vunpack.c.l.b16 %v429
      %v506 = vunpack.c.l.b16 %v430
      %v507 = vunpack.c.l.b16 %v431
      %v508 = vunpack.c.l.b16 %v432
      %v509 = vunpack.c.l.b16 %v433
      %v510 = vunpack.c.l.b16 %v434
      %v511 = vunpack.c.l.b16 %v435
      %v512 = vunpack.c.l.b16 %v436
      %v513 = vunpack.c.l.b16 %v437
      %v514 = vunpack.c.l.b16 %v438
      %v515 = vunpack.c.l.b16 %v439
      %v516 = vunpack.c.l.b16 %v440
      %v517 = vunpack.c.l.b16 %v441
      %v518 = vunpack.c.l.b16 %v442
      %v519 = vunpack.c.l.b16 %v443
      %v520 = vunpack.c.l.b16 %v444
      %v521 = vunpack.c.l.b16 %v445
      %v522 = vunpack.c.l.b16 %v446
      %v523 = vunpack.c.l.b16 %v447
      %v524 = vunpack.c.l.b16 %v448
      %v525 = vunpack.c.l.b16 %v449
      %v526 = vunpack.c.l.b16 %v450
      %v527 = vunpack.c.l.b16 %v451
      %v528 = vpack.c.b16 %v497, %v496
      %v529 = vpack.c.b16 %v499, %v498
      %v530 = vpack.c.b16 %v501, %v500
      %v531 = vpack.c.b16 %v503, %v502
      %v532 = vpack.c.b16 %v505, %v504
      %v533 = vpack.c.b16 %v507, %v506
      %v534 = vpack.c.b16 %v509, %v508
      %v535 = vpack.c.b16 %v511, %v510
      %v536 = vpack.c.b16 %v513, %v512
      %v537 = vpack.c.b16 %v515, %v514
      %v538 = vpack.c.b16 %v517, %v516
      %v539 = vpack.c.b16 %v519, %v518
      %v540 = vpack.c.b16 %v521, %v520
      %v541 = vpack.c.b16 %v523, %v522
      %v542 = vpack.c.b16 %v525, %v524
      %v543 = vpack.c.b16 %v527, %v526
      %v552 = vunpack.c.l.b16 %v452
      %v553 = vunpack.c.l.b16 %v453
      %v554 = vunpack.c.l.b16 %v454
      %v555 = vunpack.c.l.b16 %v455
      %v556 = vunpack.c.l.b16 %v456
      %v557 = vunpack.c.l.b16 %v457
      %v558 = vunpack.c.l.b16 %v458
      %v559 = vunpack.c.l.b16 %v459
      %v560 = vpack.c.b16 %v553, %v552
      %v561 = vpack.c.b16 %v555, %v554
      %v562 = vpack.c.b16 %v557, %v556
      %v563 = vpack.c.b16 %v559, %v558
      %vm568 = vcmask 523264
      %v570 = vsel %vm568, %v528, 0
      %v573 = vsel %vm568, %v529, 0
      %v576 = vsel %vm568, %v530, 0
      %v579 = vsel %vm568, %v531, 0
      %v582 = vsel %vm568, %v532, 0
      %v585 = vsel %vm568, %v533, 0
      %v588 = vsel %vm568, %v534, 0
      %v591 = vsel %vm568, %v535, 0
      %v594 = vsel %vm568, %v536, 0
      %v597 = vsel %vm568, %v537, 0
      %v600 = vsel %vm568, %v538, 0
      %v603 = vsel %vm568, %v539, 0
      %v606 = vsel %vm568, %v540, 0
      %v609 = vsel %vm568, %v541, 0
      %v612 = vsel %vm568, %v542, 0
      %v615 = vsel %vm568, %v543, 0
      %617 = vmatpush.bf16.msra.mxu0 0
      %618 = vmatpush.bf16.msra.mxu0 0
      %619 = vmatpush.bf16.msra.mxu0 0
      %620 = vmatpush.bf16.msra.mxu0 0
      %621 = vmatpush.bf16.msra.mxu0 %v563
      %622 = vmatpush.bf16.msra.mxu0 %v562
      %623 = vmatpush.bf16.msra.mxu0 %v561
      %624 = vmatpush.bf16.msra.mxu0 %v560
      %625 = vmatmul.bf16.gmra.mxu0 %v570
      %v626 = vpop.f32.mrf.mxu0
      %v627 = vadd.f32 %v462, %v626
      %v628 = vpop.f32.mrf.mxu0
      %v629 = vadd.f32 %v462, %v628
      %630 = vmatmul.bf16.gmra.mxu0 %v573
      %v631 = vpop.f32.mrf.mxu0
      %v632 = vadd.f32 %v462, %v631
      %v633 = vpop.f32.mrf.mxu0
      %v634 = vadd.f32 %v462, %v633
      %635 = vmatmul.bf16.gmra.mxu0 %v576
      %v636 = vpop.f32.mrf.mxu0
      %v637 = vadd.f32 %v462, %v636
      %v638 = vpop.f32.mrf.mxu0
      %v639 = vadd.f32 %v462, %v638
      %640 = vmatmul.bf16.gmra.mxu0 %v579
      %v641 = vpop.f32.mrf.mxu0
      %v642 = vadd.f32 %v462, %v641
      %v643 = vpop.f32.mrf.mxu0
      %v644 = vadd.f32 %v462, %v643
      %645 = vmatmul.bf16.gmra.mxu0 %v582
      %v646 = vpop.f32.mrf.mxu0
      %v647 = vadd.f32 %v462, %v646
      %v648 = vpop.f32.mrf.mxu0
      %v649 = vadd.f32 %v462, %v648
      %650 = vmatmul.bf16.gmra.mxu0 %v585
      %v651 = vpop.f32.mrf.mxu0
      %v652 = vadd.f32 %v462, %v651
      %v653 = vpop.f32.mrf.mxu0
      %v654 = vadd.f32 %v462, %v653
      %655 = vmatmul.bf16.gmra.mxu0 %v588
      %v656 = vpop.f32.mrf.mxu0
      %v657 = vadd.f32 %v462, %v656
      %v658 = vpop.f32.mrf.mxu0
      %v659 = vadd.f32 %v462, %v658
      %660 = vmatmul.bf16.gmra.mxu0 %v591
      %v661 = vpop.f32.mrf.mxu0
      %v662 = vadd.f32 %v462, %v661
      %v663 = vpop.f32.mrf.mxu0
      %v664 = vadd.f32 %v462, %v663
      %665 = vmatmul.bf16.gmra.mxu0 %v594
      %v666 = vpop.f32.mrf.mxu0
      %v667 = vadd.f32 %v462, %v666
      %v668 = vpop.f32.mrf.mxu0
      %v669 = vadd.f32 %v462, %v668
      %670 = vmatmul.bf16.gmra.mxu0 %v597
      %v671 = vpop.f32.mrf.mxu0
      %v672 = vadd.f32 %v462, %v671
      %v673 = vpop.f32.mrf.mxu0
      %v674 = vadd.f32 %v462, %v673
      %675 = vmatmul.bf16.gmra.mxu0 %v600
      %v676 = vpop.f32.mrf.mxu0
      %v677 = vadd.f32 %v462, %v676
      %v678 = vpop.f32.mrf.mxu0
      %v679 = vadd.f32 %v462, %v678
      %680 = vmatmul.bf16.gmra.mxu0 %v603
      %v681 = vpop.f32.mrf.mxu0
      %v682 = vadd.f32 %v462, %v681
      %v683 = vpop.f32.mrf.mxu0
      %v684 = vadd.f32 %v462, %v683
      %685 = vmatmul.bf16.gmra.mxu0 %v606
      %v686 = vpop.f32.mrf.mxu0
      %v687 = vadd.f32 %v462, %v686
      %v688 = vpop.f32.mrf.mxu0
      %v689 = vadd.f32 %v462, %v688
      %690 = vmatmul.bf16.gmra.mxu0 %v609
      %v691 = vpop.f32.mrf.mxu0
      %v692 = vadd.f32 %v462, %v691
      %v693 = vpop.f32.mrf.mxu0
      %v694 = vadd.f32 %v462, %v693
      %695 = vmatmul.bf16.gmra.mxu0 %v612
      %v696 = vpop.f32.mrf.mxu0
      %v697 = vadd.f32 %v462, %v696
      %v698 = vpop.f32.mrf.mxu0
      %v699 = vadd.f32 %v462, %v698
      %700 = vmatmul.bf16.gmra.mxu0 %v615
      %v701 = vpop.f32.mrf.mxu0
      %v702 = vadd.f32 %v462, %v701
      %v703 = vpop.f32.mrf.mxu0
      %v704 = vadd.f32 %v462, %v703
      %705 = vdwg.mxu0
      %v706 = vld [vmem:[%s3] sm:$0xf]
      %v707 = vld [vmem:[%s3 + $0x4] sm:$0xf]
      %v708 = vld [vmem:[%s3 + $0x8] sm:$0xf]
      %v709 = vld [vmem:[%s3 + $0xc] sm:$0xf]
      %v710 = vld [vmem:[%s3 + $0x10] sm:$0xf]
      %v711 = vld [vmem:[%s3 + $0x14] sm:$0xf]
      %v712 = vld [vmem:[%s3 + $0x18] sm:$0xf]
      %v713 = vld [vmem:[%s3 + $0x1c] sm:$0xf]
      %v714 = vld [vmem:[%s4] sm:$0x1]
      %v716 = vperm.slane %v714, 0
      %v726 = vunpack.c.l.b16 %v706
      %v727 = vunpack.c.l.b16 %v707
      %v728 = vunpack.c.l.b16 %v708
      %v729 = vunpack.c.l.b16 %v709
      %v730 = vunpack.c.l.b16 %v710
      %v731 = vunpack.c.l.b16 %v711
      %v732 = vunpack.c.l.b16 %v712
      %v733 = vunpack.c.l.b16 %v713
      %v734 = vpack.c.b16 %v727, %v726
      %v735 = vpack.c.b16 %v729, %v728
      %v736 = vpack.c.b16 %v731, %v730
      %v737 = vpack.c.b16 %v733, %v732
      %742 = vmatpush.bf16.msra.mxu0 0
      %743 = vmatpush.bf16.msra.mxu0 0
      %744 = vmatpush.bf16.msra.mxu0 0
      %745 = vmatpush.bf16.msra.mxu0 0
      %746 = vmatpush.bf16.msra.mxu0 %v737
      %747 = vmatpush.bf16.msra.mxu0 %v736
      %748 = vmatpush.bf16.msra.mxu0 %v735
      %749 = vmatpush.bf16.msra.mxu0 %v734
      %750 = vmatmul.bf16.gmra.mxu0 %v570
      %v751 = vpop.f32.mrf.mxu0
      %v752 = vadd.f32 %v716, %v751
      %v753 = vpop.f32.mrf.mxu0
      %v754 = vadd.f32 %v716, %v753
      %755 = vmatmul.bf16.gmra.mxu0 %v573
      %v756 = vpop.f32.mrf.mxu0
      %v757 = vadd.f32 %v716, %v756
      %v758 = vpop.f32.mrf.mxu0
      %v759 = vadd.f32 %v716, %v758
      %760 = vmatmul.bf16.gmra.mxu0 %v576
      %v761 = vpop.f32.mrf.mxu0
      %v762 = vadd.f32 %v716, %v761
      %v763 = vpop.f32.mrf.mxu0
      %v764 = vadd.f32 %v716, %v763
      %765 = vmatmul.bf16.gmra.mxu0 %v579
      %v766 = vpop.f32.mrf.mxu0
      %v767 = vadd.f32 %v716, %v766
      %v768 = vpop.f32.mrf.mxu0
      %v769 = vadd.f32 %v716, %v768
      %770 = vmatmul.bf16.gmra.mxu0 %v582
      %v771 = vpop.f32.mrf.mxu0
      %v772 = vadd.f32 %v716, %v771
      %v773 = vpop.f32.mrf.mxu0
      %v774 = vadd.f32 %v716, %v773
      %775 = vmatmul.bf16.gmra.mxu0 %v585
      %v776 = vpop.f32.mrf.mxu0
      %v777 = vadd.f32 %v716, %v776
      %v778 = vpop.f32.mrf.mxu0
      %v779 = vadd.f32 %v716, %v778
      %780 = vmatmul.bf16.gmra.mxu0 %v588
      %v781 = vpop.f32.mrf.mxu0
      %v782 = vadd.f32 %v716, %v781
      %v783 = vpop.f32.mrf.mxu0
      %v784 = vadd.f32 %v716, %v783
      %785 = vmatmul.bf16.gmra.mxu0 %v591
      %v786 = vpop.f32.mrf.mxu0
      %v787 = vadd.f32 %v716, %v786
      %v788 = vpop.f32.mrf.mxu0
      %v789 = vadd.f32 %v716, %v788
      %790 = vmatmul.bf16.gmra.mxu0 %v594
      %v791 = vpop.f32.mrf.mxu0
      %v792 = vadd.f32 %v716, %v791
      %v793 = vpop.f32.mrf.mxu0
      %v794 = vadd.f32 %v716, %v793
      %795 = vmatmul.bf16.gmra.mxu0 %v597
      %v796 = vpop.f32.mrf.mxu0
      %v797 = vadd.f32 %v716, %v796
      %v798 = vpop.f32.mrf.mxu0
      %v799 = vadd.f32 %v716, %v798
      %800 = vmatmul.bf16.gmra.mxu0 %v600
      %v801 = vpop.f32.mrf.mxu0
      %v802 = vadd.f32 %v716, %v801
      %v803 = vpop.f32.mrf.mxu0
      %v804 = vadd.f32 %v716, %v803
      %805 = vmatmul.bf16.gmra.mxu0 %v603
      %v806 = vpop.f32.mrf.mxu0
      %v807 = vadd.f32 %v716, %v806
      %v808 = vpop.f32.mrf.mxu0
      %v809 = vadd.f32 %v716, %v808
      %810 = vmatmul.bf16.gmra.mxu0 %v606
      %v811 = vpop.f32.mrf.mxu0
      %v812 = vadd.f32 %v716, %v811
      %v813 = vpop.f32.mrf.mxu0
      %v814 = vadd.f32 %v716, %v813
      %815 = vmatmul.bf16.gmra.mxu0 %v609
      %v816 = vpop.f32.mrf.mxu0
      %v817 = vadd.f32 %v716, %v816
      %v818 = vpop.f32.mrf.mxu0
      %v819 = vadd.f32 %v716, %v818
      %820 = vmatmul.bf16.gmra.mxu0 %v612
      %v821 = vpop.f32.mrf.mxu0
      %v822 = vadd.f32 %v716, %v821
      %v823 = vpop.f32.mrf.mxu0
      %v824 = vadd.f32 %v716, %v823
      %825 = vmatmul.bf16.gmra.mxu0 %v615
      %v826 = vpop.f32.mrf.mxu0
      %v827 = vadd.f32 %v716, %v826
      %v828 = vpop.f32.mrf.mxu0
      %v829 = vadd.f32 %v716, %v828
      %830 = vdwg.mxu0
      %v831 = vld [vmem:[%s5] sm:$0xf]
      %v832 = vld [vmem:[%s5 + $0x4] sm:$0xf]
      %v833 = vld [vmem:[%s5 + $0x8] sm:$0xf]
      %v834 = vld [vmem:[%s5 + $0xc] sm:$0xf]
      %v835 = vld [vmem:[%s5 + $0x10] sm:$0xf]
      %v836 = vld [vmem:[%s5 + $0x14] sm:$0xf]
      %v837 = vld [vmem:[%s5 + $0x18] sm:$0xf]
      %v838 = vld [vmem:[%s5 + $0x1c] sm:$0xf]
      %v839 = vld [vmem:[%s6] sm:$0x1]
      %v841 = vperm.slane %v839, 0
      %v851 = vunpack.c.l.b16 %v831
      %v852 = vunpack.c.l.b16 %v832
      %v853 = vunpack.c.l.b16 %v833
      %v854 = vunpack.c.l.b16 %v834
      %v855 = vunpack.c.l.b16 %v835
      %v856 = vunpack.c.l.b16 %v836
      %v857 = vunpack.c.l.b16 %v837
      %v858 = vunpack.c.l.b16 %v838
      %v859 = vpack.c.b16 %v852, %v851
      %v860 = vpack.c.b16 %v854, %v853
      %v861 = vpack.c.b16 %v856, %v855
      %v862 = vpack.c.b16 %v858, %v857
      %867 = vmatpush.bf16.msra.mxu0 0
      %868 = vmatpush.bf16.msra.mxu0 0
      %869 = vmatpush.bf16.msra.mxu0 0
      %870 = vmatpush.bf16.msra.mxu0 0
      %871 = vmatpush.bf16.msra.mxu0 %v862
      %872 = vmatpush.bf16.msra.mxu0 %v861
      %873 = vmatpush.bf16.msra.mxu0 %v860
      %874 = vmatpush.bf16.msra.mxu0 %v859
      %875 = vmatmul.bf16.gmra.mxu0 %v570
      %v876 = vpop.f32.mrf.mxu0
      %v877 = vadd.f32 %v841, %v876
      %v878 = vpop.f32.mrf.mxu0
      %v879 = vadd.f32 %v841, %v878
      %880 = vmatmul.bf16.gmra.mxu0 %v573
      %v881 = vpop.f32.mrf.mxu0
      %v882 = vadd.f32 %v841, %v881
      %v883 = vpop.f32.mrf.mxu0
      %v884 = vadd.f32 %v841, %v883
      %885 = vmatmul.bf16.gmra.mxu0 %v576
      %v886 = vpop.f32.mrf.mxu0
      %v887 = vadd.f32 %v841, %v886
      %v888 = vpop.f32.mrf.mxu0
      %v889 = vadd.f32 %v841, %v888
      %890 = vmatmul.bf16.gmra.mxu0 %v579
      %v891 = vpop.f32.mrf.mxu0
      %v892 = vadd.f32 %v841, %v891
      %v893 = vpop.f32.mrf.mxu0
      %v894 = vadd.f32 %v841, %v893
      %895 = vmatmul.bf16.gmra.mxu0 %v582
      %v896 = vpop.f32.mrf.mxu0
      %v897 = vadd.f32 %v841, %v896
      %v898 = vpop.f32.mrf.mxu0
      %v899 = vadd.f32 %v841, %v898
      %900 = vmatmul.bf16.gmra.mxu0 %v585
      %v901 = vpop.f32.mrf.mxu0
      %v902 = vadd.f32 %v841, %v901
      %v903 = vpop.f32.mrf.mxu0
      %v904 = vadd.f32 %v841, %v903
      %905 = vmatmul.bf16.gmra.mxu0 %v588
      %v906 = vpop.f32.mrf.mxu0
      %v907 = vadd.f32 %v841, %v906
      %v908 = vpop.f32.mrf.mxu0
      %v909 = vadd.f32 %v841, %v908
      %910 = vmatmul.bf16.gmra.mxu0 %v591
      %v911 = vpop.f32.mrf.mxu0
      %v912 = vadd.f32 %v841, %v911
      %v913 = vpop.f32.mrf.mxu0
      %v914 = vadd.f32 %v841, %v913
      %915 = vmatmul.bf16.gmra.mxu0 %v594
      %v916 = vpop.f32.mrf.mxu0
      %v917 = vadd.f32 %v841, %v916
      %v918 = vpop.f32.mrf.mxu0
      %v919 = vadd.f32 %v841, %v918
      %920 = vmatmul.bf16.gmra.mxu0 %v597
      %v921 = vpop.f32.mrf.mxu0
      %v922 = vadd.f32 %v841, %v921
      %v923 = vpop.f32.mrf.mxu0
      %v924 = vadd.f32 %v841, %v923
      %925 = vmatmul.bf16.gmra.mxu0 %v600
      %v926 = vpop.f32.mrf.mxu0
      %v927 = vadd.f32 %v841, %v926
      %v928 = vpop.f32.mrf.mxu0
      %v929 = vadd.f32 %v841, %v928
      %930 = vmatmul.bf16.gmra.mxu0 %v603
      %v931 = vpop.f32.mrf.mxu0
      %v932 = vadd.f32 %v841, %v931
      %v933 = vpop.f32.mrf.mxu0
      %v934 = vadd.f32 %v841, %v933
      %935 = vmatmul.bf16.gmra.mxu0 %v606
      %v936 = vpop.f32.mrf.mxu0
      %v937 = vadd.f32 %v841, %v936
      %v938 = vpop.f32.mrf.mxu0
      %v939 = vadd.f32 %v841, %v938
      %940 = vmatmul.bf16.gmra.mxu0 %v609
      %v941 = vpop.f32.mrf.mxu0
      %v942 = vadd.f32 %v841, %v941
      %v943 = vpop.f32.mrf.mxu0
      %v944 = vadd.f32 %v841, %v943
      %945 = vmatmul.bf16.gmra.mxu0 %v612
      %v946 = vpop.f32.mrf.mxu0
      %v947 = vadd.f32 %v841, %v946
      %v948 = vpop.f32.mrf.mxu0
      %v949 = vadd.f32 %v841, %v948
      %950 = vmatmul.bf16.gmra.mxu0 %v615
      %v951 = vpop.f32.mrf.mxu0
      %v952 = vadd.f32 %v841, %v951
      %v953 = vpop.f32.mrf.mxu0
      %v954 = vadd.f32 %v841, %v953
      %955 = vdwg.mxu0
      %v956 = vpack.c.bf16 %v627, %v627
      %v957 = vpack.c.bf16 %v629, %v629
      %v958 = vpack.c.bf16 %v632, %v632
      %v959 = vpack.c.bf16 %v634, %v634
      %v960 = vpack.c.bf16 %v637, %v637
      %v961 = vpack.c.bf16 %v639, %v639
      %v962 = vpack.c.bf16 %v642, %v642
      %v963 = vpack.c.bf16 %v644, %v644
      %v964 = vpack.c.bf16 %v647, %v647
      %v965 = vpack.c.bf16 %v649, %v649
      %v966 = vpack.c.bf16 %v652, %v652
      %v967 = vpack.c.bf16 %v654, %v654
      %v968 = vpack.c.bf16 %v657, %v657
      %v969 = vpack.c.bf16 %v659, %v659
      %v970 = vpack.c.bf16 %v662, %v662
      %v971 = vpack.c.bf16 %v664, %v664
      %v972 = vpack.c.bf16 %v667, %v667
      %v973 = vpack.c.bf16 %v669, %v669
      %v974 = vpack.c.bf16 %v672, %v672
      %v975 = vpack.c.bf16 %v674, %v674
      %v976 = vpack.c.bf16 %v677, %v677
      %v977 = vpack.c.bf16 %v679, %v679
      %v978 = vpack.c.bf16 %v682, %v682
      %v979 = vpack.c.bf16 %v684, %v684
      %v980 = vpack.c.bf16 %v687, %v687
      %v981 = vpack.c.bf16 %v689, %v689
      %v982 = vpack.c.bf16 %v692, %v692
      %v983 = vpack.c.bf16 %v694, %v694
      %v984 = vpack.c.bf16 %v697, %v697
      %v985 = vpack.c.bf16 %v699, %v699
      %v986 = vpack.c.bf16 %v702, %v702
      %v987 = vpack.c.bf16 %v704, %v704
      %vm988 = vcmask 60416
      %989 = vst.msk [vmem:[%s397] sm:$0xf] %vm988, %v956
      %990 = vst.msk [vmem:[%s397 + $0x4] sm:$0xf] %vm988, %v957
      %991 = vst.msk [vmem:[%s397 + $0x8] sm:$0xf] %vm988, %v958
      %992 = vst.msk [vmem:[%s397 + $0xc] sm:$0xf] %vm988, %v959
      %993 = vst.msk [vmem:[%s397 + $0x10] sm:$0xf] %vm988, %v960
      %994 = vst.msk [vmem:[%s397 + $0x14] sm:$0xf] %vm988, %v961
      %995 = vst.msk [vmem:[%s397 + $0x18] sm:$0xf] %vm988, %v962
      %996 = vst.msk [vmem:[%s397 + $0x1c] sm:$0xf] %vm988, %v963
      %997 = vst.msk [vmem:[%s397 + $0x20] sm:$0xf] %vm988, %v964
      %998 = vst.msk [vmem:[%s397 + $0x24] sm:$0xf] %vm988, %v965
      %999 = vst.msk [vmem:[%s397 + $0x28] sm:$0xf] %vm988, %v966
      %1000 = vst.msk [vmem:[%s397 + $0x2c] sm:$0xf] %vm988, %v967
      %1001 = vst.msk [vmem:[%s397 + $0x30] sm:$0xf] %vm988, %v968
      %1002 = vst.msk [vmem:[%s397 + $0x34] sm:$0xf] %vm988, %v969
      %1003 = vst.msk [vmem:[%s397 + $0x38] sm:$0xf] %vm988, %v970
      %1004 = vst.msk [vmem:[%s397 + $0x3c] sm:$0xf] %vm988, %v971
      %1005 = vst.msk [vmem:[%s397 + $0x40] sm:$0xf] %vm988, %v972
      %1006 = vst.msk [vmem:[%s397 + $0x44] sm:$0xf] %vm988, %v973
      %1007 = vst.msk [vmem:[%s397 + $0x48] sm:$0xf] %vm988, %v974
      %1008 = vst.msk [vmem:[%s397 + $0x4c] sm:$0xf] %vm988, %v975
      %1009 = vst.msk [vmem:[%s397 + $0x50] sm:$0xf] %vm988, %v976
      %1010 = vst.msk [vmem:[%s397 + $0x54] sm:$0xf] %vm988, %v977
      %1011 = vst.msk [vmem:[%s397 + $0x58] sm:$0xf] %vm988, %v978
      %1012 = vst.msk [vmem:[%s397 + $0x5c] sm:$0xf] %vm988, %v979
      %1013 = vst.msk [vmem:[%s397 + $0x60] sm:$0xf] %vm988, %v980
      %1014 = vst.msk [vmem:[%s397 + $0x64] sm:$0xf] %vm988, %v981
      %1015 = vst.msk [vmem:[%s397 + $0x68] sm:$0xf] %vm988, %v982
      %1016 = vst.msk [vmem:[%s397 + $0x6c] sm:$0xf] %vm988, %v983
      %1017 = vst.msk [vmem:[%s397 + $0x70] sm:$0xf] %vm988, %v984
      %1018 = vst.msk [vmem:[%s397 + $0x74] sm:$0xf] %vm988, %v985
      %1019 = vst.msk [vmem:[%s397 + $0x78] sm:$0xf] %vm988, %v986
      %1020 = vst.msk [vmem:[%s397 + $0x7c] sm:$0xf] %vm988, %v987
      %v1021 = vpack.c.bf16 %v752, %v752
      %v1022 = vpack.c.bf16 %v754, %v754
      %v1023 = vpack.c.bf16 %v757, %v757
      %v1024 = vpack.c.bf16 %v759, %v759
      %v1025 = vpack.c.bf16 %v762, %v762
      %v1026 = vpack.c.bf16 %v764, %v764
      %v1027 = vpack.c.bf16 %v767, %v767
      %v1028 = vpack.c.bf16 %v769, %v769
      %v1029 = vpack.c.bf16 %v772, %v772
      %v1030 = vpack.c.bf16 %v774, %v774
      %v1031 = vpack.c.bf16 %v777, %v777
      %v1032 = vpack.c.bf16 %v779, %v779
      %v1033 = vpack.c.bf16 %v782, %v782
      %v1034 = vpack.c.bf16 %v784, %v784
      %v1035 = vpack.c.bf16 %v787, %v787
      %v1036 = vpack.c.bf16 %v789, %v789
      %v1037 = vpack.c.bf16 %v792, %v792
      %v1038 = vpack.c.bf16 %v794, %v794
      %v1039 = vpack.c.bf16 %v797, %v797
      %v1040 = vpack.c.bf16 %v799, %v799
      %v1041 = vpack.c.bf16 %v802, %v802
      %v1042 = vpack.c.bf16 %v804, %v804
      %v1043 = vpack.c.bf16 %v807, %v807
      %v1044 = vpack.c.bf16 %v809, %v809
      %v1045 = vpack.c.bf16 %v812, %v812
      %v1046 = vpack.c.bf16 %v814, %v814
      %v1047 = vpack.c.bf16 %v817, %v817
      %v1048 = vpack.c.bf16 %v819, %v819
      %v1049 = vpack.c.bf16 %v822, %v822
      %v1050 = vpack.c.bf16 %v824, %v824
      %v1051 = vpack.c.bf16 %v827, %v827
      %v1052 = vpack.c.bf16 %v829, %v829
      %1053 = vst.msk [vmem:[%s407] sm:$0xf] %vm988, %v1021
      %1054 = vst.msk [vmem:[%s407 + $0x4] sm:$0xf] %vm988, %v1022
      %1055 = vst.msk [vmem:[%s407 + $0x8] sm:$0xf] %vm988, %v1023
      %1056 = vst.msk [vmem:[%s407 + $0xc] sm:$0xf] %vm988, %v1024
      %1057 = vst.msk [vmem:[%s407 + $0x10] sm:$0xf] %vm988, %v1025
      %1058 = vst.msk [vmem:[%s407 + $0x14] sm:$0xf] %vm988, %v1026
      %1059 = vst.msk [vmem:[%s407 + $0x18] sm:$0xf] %vm988, %v1027
      %1060 = vst.msk [vmem:[%s407 + $0x1c] sm:$0xf] %vm988, %v1028
      %1061 = vst.msk [vmem:[%s407 + $0x20] sm:$0xf] %vm988, %v1029
      %1062 = vst.msk [vmem:[%s407 + $0x24] sm:$0xf] %vm988, %v1030
      %1063 = vst.msk [vmem:[%s407 + $0x28] sm:$0xf] %vm988, %v1031
      %1064 = vst.msk [vmem:[%s407 + $0x2c] sm:$0xf] %vm988, %v1032
      %1065 = vst.msk [vmem:[%s407 + $0x30] sm:$0xf] %vm988, %v1033
      %1066 = vst.msk [vmem:[%s407 + $0x34] sm:$0xf] %vm988, %v1034
      %1067 = vst.msk [vmem:[%s407 + $0x38] sm:$0xf] %vm988, %v1035
      %1068 = vst.msk [vmem:[%s407 + $0x3c] sm:$0xf] %vm988, %v1036
      %1069 = vst.msk [vmem:[%s407 + $0x40] sm:$0xf] %vm988, %v1037
      %1070 = vst.msk [vmem:[%s407 + $0x44] sm:$0xf] %vm988, %v1038
      %1071 = vst.msk [vmem:[%s407 + $0x48] sm:$0xf] %vm988, %v1039
      %1072 = vst.msk [vmem:[%s407 + $0x4c] sm:$0xf] %vm988, %v1040
      %1073 = vst.msk [vmem:[%s407 + $0x50] sm:$0xf] %vm988, %v1041
      %1074 = vst.msk [vmem:[%s407 + $0x54] sm:$0xf] %vm988, %v1042
      %1075 = vst.msk [vmem:[%s407 + $0x58] sm:$0xf] %vm988, %v1043
      %1076 = vst.msk [vmem:[%s407 + $0x5c] sm:$0xf] %vm988, %v1044
      %1077 = vst.msk [vmem:[%s407 + $0x60] sm:$0xf] %vm988, %v1045
      %1078 = vst.msk [vmem:[%s407 + $0x64] sm:$0xf] %vm988, %v1046
      %1079 = vst.msk [vmem:[%s407 + $0x68] sm:$0xf] %vm988, %v1047
      %1080 = vst.msk [vmem:[%s407 + $0x6c] sm:$0xf] %vm988, %v1048
      %1081 = vst.msk [vmem:[%s407 + $0x70] sm:$0xf] %vm988, %v1049
      %1082 = vst.msk [vmem:[%s407 + $0x74] sm:$0xf] %vm988, %v1050
      %1083 = vst.msk [vmem:[%s407 + $0x78] sm:$0xf] %vm988, %v1051
      %1084 = vst.msk [vmem:[%s407 + $0x7c] sm:$0xf] %vm988, %v1052
      %v1085 = vpack.c.bf16 %v877, %v877
      %v1086 = vpack.c.bf16 %v879, %v879
      %v1087 = vpack.c.bf16 %v882, %v882
      %v1088 = vpack.c.bf16 %v884, %v884
      %v1089 = vpack.c.bf16 %v887, %v887
      %v1090 = vpack.c.bf16 %v889, %v889
      %v1091 = vpack.c.bf16 %v892, %v892
      %v1092 = vpack.c.bf16 %v894, %v894
      %v1093 = vpack.c.bf16 %v897, %v897
      %v1094 = vpack.c.bf16 %v899, %v899
      %v1095 = vpack.c.bf16 %v902, %v902
      %v1096 = vpack.c.bf16 %v904, %v904
      %v1097 = vpack.c.bf16 %v907, %v907
      %v1098 = vpack.c.bf16 %v909, %v909
      %v1099 = vpack.c.bf16 %v912, %v912
      %v1100 = vpack.c.bf16 %v914, %v914
      %v1101 = vpack.c.bf16 %v917, %v917
      %v1102 = vpack.c.bf16 %v919, %v919
      %v1103 = vpack.c.bf16 %v922, %v922
      %v1104 = vpack.c.bf16 %v924, %v924
      %v1105 = vpack.c.bf16 %v927, %v927
      %v1106 = vpack.c.bf16 %v929, %v929
      %v1107 = vpack.c.bf16 %v932, %v932
      %v1108 = vpack.c.bf16 %v934, %v934
      %v1109 = vpack.c.bf16 %v937, %v937
      %v1110 = vpack.c.bf16 %v939, %v939
      %v1111 = vpack.c.bf16 %v942, %v942
      %v1112 = vpack.c.bf16 %v944, %v944
      %v1113 = vpack.c.bf16 %v947, %v947
      %v1114 = vpack.c.bf16 %v949, %v949
      %v1115 = vpack.c.bf16 %v952, %v952
      %v1116 = vpack.c.bf16 %v954, %v954
      %vm1117 = vcmask 519168
      %1118 = vst.msk [vmem:[%s417] sm:$0xf] %vm1117, %v1085
      %1119 = vst.msk [vmem:[%s417 + $0x4] sm:$0xf] %vm1117, %v1086
      %1120 = vst.msk [vmem:[%s417 + $0x8] sm:$0xf] %vm1117, %v1087
      %1121 = vst.msk [vmem:[%s417 + $0xc] sm:$0xf] %vm1117, %v1088
      %1122 = vst.msk [vmem:[%s417 + $0x10] sm:$0xf] %vm1117, %v1089
      %1123 = vst.msk [vmem:[%s417 + $0x14] sm:$0xf] %vm1117, %v1090
      %1124 = vst.msk [vmem:[%s417 + $0x18] sm:$0xf] %vm1117, %v1091
      %1125 = vst.msk [vmem:[%s417 + $0x1c] sm:$0xf] %vm1117, %v1092
      %1126 = vst.msk [vmem:[%s417 + $0x20] sm:$0xf] %vm1117, %v1093
      %1127 = vst.msk [vmem:[%s417 + $0x24] sm:$0xf] %vm1117, %v1094
      %1128 = vst.msk [vmem:[%s417 + $0x28] sm:$0xf] %vm1117, %v1095
      %1129 = vst.msk [vmem:[%s417 + $0x2c] sm:$0xf] %vm1117, %v1096
      %1130 = vst.msk [vmem:[%s417 + $0x30] sm:$0xf] %vm1117, %v1097
      %1131 = vst.msk [vmem:[%s417 + $0x34] sm:$0xf] %vm1117, %v1098
      %1132 = vst.msk [vmem:[%s417 + $0x38] sm:$0xf] %vm1117, %v1099
      %1133 = vst.msk [vmem:[%s417 + $0x3c] sm:$0xf] %vm1117, %v1100
      %1134 = vst.msk [vmem:[%s417 + $0x40] sm:$0xf] %vm1117, %v1101
      %1135 = vst.msk [vmem:[%s417 + $0x44] sm:$0xf] %vm1117, %v1102
      %1136 = vst.msk [vmem:[%s417 + $0x48] sm:$0xf] %vm1117, %v1103
      %1137 = vst.msk [vmem:[%s417 + $0x4c] sm:$0xf] %vm1117, %v1104
      %1138 = vst.msk [vmem:[%s417 + $0x50] sm:$0xf] %vm1117, %v1105
      %1139 = vst.msk [vmem:[%s417 + $0x54] sm:$0xf] %vm1117, %v1106
      %1140 = vst.msk [vmem:[%s417 + $0x58] sm:$0xf] %vm1117, %v1107
      %1141 = vst.msk [vmem:[%s417 + $0x5c] sm:$0xf] %vm1117, %v1108
      %1142 = vst.msk [vmem:[%s417 + $0x60] sm:$0xf] %vm1117, %v1109
      %1143 = vst.msk [vmem:[%s417 + $0x64] sm:$0xf] %vm1117, %v1110
      %1144 = vst.msk [vmem:[%s417 + $0x68] sm:$0xf] %vm1117, %v1111
      %1145 = vst.msk [vmem:[%s417 + $0x6c] sm:$0xf] %vm1117, %v1112
      %1146 = vst.msk [vmem:[%s417 + $0x70] sm:$0xf] %vm1117, %v1113
      %1147 = vst.msk [vmem:[%s417 + $0x74] sm:$0xf] %vm1117, %v1114
      %1148 = vst.msk [vmem:[%s417 + $0x78] sm:$0xf] %vm1117, %v1115
      %1149 = vst.msk [vmem:[%s417 + $0x7c] sm:$0xf] %vm1117, %v1116
      %s1150 = smul.u32 32, %s26
      %p1151 = scmp.lt.s32.totalorder %s25, 1
      %s1152 = scalar_select %p1151, %s25, 1
      %p1153 = scmp.lt.s32.totalorder %s1150, 31
      %s1154 = scalar_select %p1153, %s1150, 31
      %s1155 = smul.addr %s1152, 32
      %s1156 = sadd.s32 %s1154, %s1155
      %s1157 = smul.addr %s1156, 4
      %s1158 = scalar_lea.vmem %s7, %s1157
      %s1159 = smul.u32 32, %s26
      %p1160 = scmp.lt.s32.totalorder %s25, 1
      %s1161 = scalar_select %p1160, %s25, 1
      %p1162 = scmp.lt.s32.totalorder %s1159, 31
      %s1163 = scalar_select %p1162, %s1159, 31
      %s1164 = smul.addr %s1161, 32
      %s1165 = sadd.s32 %s1163, %s1164
      %s1166 = smul.addr %s1165, 4
      %s1167 = scalar_lea.vmem %s8, %s1166
      %s1168 = smul.u32 32, %s26
      %p1169 = scmp.lt.s32.totalorder %s25, 1
      %s1170 = scalar_select %p1169, %s25, 1
      %p1171 = scmp.lt.s32.totalorder %s1168, 31
      %s1172 = scalar_select %p1171, %s1168, 31
      %s1173 = smul.addr %s1170, 32
      %s1174 = sadd.s32 %s1172, %s1173
      %s1175 = smul.addr %s1174, 4
      %s1176 = scalar_lea.vmem %s9, %s1175
      // Predicated region
      $region49: #{tpu_custom_call.1} parent=47 // pred_check
        %p1177 = pneg %p207
      $region50: #{tpu_custom_call.1} parent=47 // pred_check_branch
        %1179 = sbr.rel (%p1177) target = $region52
      $region51: #{tpu_custom_call.1} parent=47 // pred_region
        %s1180 = smul.u32 32, %s26
      $region52: #{tpu_custom_call.1} parent=47 // pred_fallthru
        _
      // Predicated region
      $region53: #{tpu_custom_call.1} parent=47 // pred_check
        %p1181 = pneg %p235
      $region54: #{tpu_custom_call.1} parent=47 // pred_check_branch
        %1183 = sbr.rel (%p1181) target = $region56
      $region55: #{tpu_custom_call.1} parent=47 // pred_region
        %s1184 = smul.u32 32, %s26
      $region56: #{tpu_custom_call.1} parent=47 // pred_fallthru
        _
      // Predicated region
      $region57: #{tpu_custom_call.1} parent=47 // pred_check
        %p1185 = pneg %p263
      $region58: #{tpu_custom_call.1} parent=47 // pred_check_branch
        %1187 = sbr.rel (%p1185) target = $region60
      $region59: #{tpu_custom_call.1} parent=47 // pred_region
        %s1188 = smul.u32 32, %s26
      $region60: #{tpu_custom_call.1} parent=47 // pred_fallthru
        _
    $region48: #{tpu_custom_call.1} parent=5 // pred_fallthru
      _
    %p1189 = scmp.le.s32.totalorder 2, %s16
    // Predicated region
    $region61: #{tpu_custom_call.1} parent=5 // pred_check
      %p1190 = pneg %p1189
    $region62: #{tpu_custom_call.1} parent=5 // pred_check_branch
      %1192 = sbr.rel (%p1190) target = $region64
    $region63: #{tpu_custom_call.1} parent=5 // pred_region
      %s1193 = ssub.s32 %s16, 2
      // Predicated region
      $region65: #{tpu_custom_call.1} parent=63 // pred_check
        %p1194 = pneg %p213
      $region66: #{tpu_custom_call.1} parent=63 // pred_check_branch
        %1196 = sbr.rel (%p1194) target = $region68
      $region67: #{tpu_custom_call.1} parent=63 // pred_region
        %s1197 = smul.u32 32, %s28
        %p1198 = scmp.lt.s32.totalorder %s27, 1
        %s1199 = scalar_select %p1198, %s27, 1
        %p1200 = scmp.lt.s32.totalorder %s1197, 31
        %s1201 = scalar_select %p1200, %s1197, 31
        %s1202 = smul.addr %s1199, 32
        %s1203 = sadd.s32 %s1201, %s1202
        %s1204 = smul.addr %s1203, 4
        %s1205 = scalar_lea.vmem %s7, %s1204
      $region68: #{tpu_custom_call.1} parent=63 // pred_fallthru
        _
      // Predicated region
      $region69: #{tpu_custom_call.1} parent=63 // pred_check
        %p1206 = pneg %p241
      $region70: #{tpu_custom_call.1} parent=63 // pred_check_branch
        %1208 = sbr.rel (%p1206) target = $region72
      $region71: #{tpu_custom_call.1} parent=63 // pred_region
        %s1209 = smul.u32 32, %s28
        %p1210 = scmp.lt.s32.totalorder %s27, 1
        %s1211 = scalar_select %p1210, %s27, 1
        %p1212 = scmp.lt.s32.totalorder %s1209, 31
        %s1213 = scalar_select %p1212, %s1209, 31
        %s1214 = smul.addr %s1211, 32
        %s1215 = sadd.s32 %s1213, %s1214
        %s1216 = smul.addr %s1215, 4
        %s1217 = scalar_lea.vmem %s8, %s1216
      $region72: #{tpu_custom_call.1} parent=63 // pred_fallthru
        _
      // Predicated region
      $region73: #{tpu_custom_call.1} parent=63 // pred_check
        %p1218 = pneg %p269
      $region74: #{tpu_custom_call.1} parent=63 // pred_check_branch
        %1220 = sbr.rel (%p1218) target = $region76
      $region75: #{tpu_custom_call.1} parent=63 // pred_region
        %s1221 = smul.u32 32, %s28
        %p1222 = scmp.lt.s32.totalorder %s27, 1
        %s1223 = scalar_select %p1222, %s27, 1
        %p1224 = scmp.lt.s32.totalorder %s1221, 31
        %s1225 = scalar_select %p1224, %s1221, 31
        %s1226 = smul.addr %s1223, 32
        %s1227 = sadd.s32 %s1225, %s1226
        %s1228 = smul.addr %s1227, 4
        %s1229 = scalar_lea.vmem %s9, %s1228
      $region76: #{tpu_custom_call.1} parent=63 // pred_fallthru
        _
    $region64: #{tpu_custom_call.1} parent=5 // pred_fallthru
      _
  $region6: #{tpu_custom_call.1} parent=0 // loop_footer
    %s20 = sadd.s32 1, %s16
  $region7: #{tpu_custom_call.1} parent=0 // loop_footer_branch
    %15 = sbr.rel target = $region3
  $region8: #{tpu_custom_call.1} parent=0 // loop_exit
    _

</llo_original>
